<compile_context>
chip_gen: v7x
topology: tpu7x:2x2x1
jax: 0.10.0
libtpu: 0.0.40
codegen_flags: <defaults>
</compile_context>

<pallas_src>
import functools

import jax
import jax.numpy as jnp
from jax.experimental import pallas as pl
from jax.experimental.pallas import tpu as pltpu


LANE = 128  # TPU lane width — head slices and output padded to multiples of this.

# Cached result of probing pltpu.CORE_PARALLEL support on the running chip/jax.
_CORE_PARALLEL_OK = [None]  # None = untested, True/False once probed


def _round_up(v, m):
    return ((v + m - 1) // m) * m


# ------------------------------- kernel ------------------------------------

def _gat_fused_kernel(x_ref, wh_ref, a_ref, wo_ref, out_ref, *,
                      alpha, nheads, nhid_pad, n_nodes, graphs):
    """Whole GAT forward for one group of `graphs` graphs (one grid step).

    x_ref  : (1, G*N, Fin)        node features, graphs stacked along rows
    wh_ref : (Fin, H*nhid_pad)    all head projection matrices, lane-aligned
    a_ref  : (2H+2, A)            rows [a1_h0, a2_h0, ..., a1_out, a2_out], zero-padded
    wo_ref : (H*nhid_pad, P)      output-layer W, zero rows in head padding,
                                  zero cols beyond noutput (P = lane-dense width)
    out_ref: (1, G*N, P)          lane-dense output (columns >= noutput are zero)
    """
    N = n_nodes
    hid_cat = nheads * nhid_pad
    P = out_ref.shape[-1]

    x = x_ref[0, :, :]                                     # (G*N, Fin)
    w_all = wh_ref[...]                                    # (Fin, H*nhid_pad)
    w_o = wo_ref[...]                                      # (H*nhid_pad, P)

    # (1) ONE wide MXU matmul: every graph's, every head's h = x @ W_k at once.
    h_all = jnp.dot(x, w_all, preferred_element_type=jnp.float32)   # (G*N, H*nhid_pad)

    def attention(hh, a1_row, a2_row):
        # e[i,j] = leakyrelu(h_i·a1 + h_j·a2); softmax over j; att @ h.
        # f (column) via VPU multiply + XLU lane-reduce; g (row) via one NT
        # dot_general so it lands lane-major (no transpose/relayout).
        f_col = jnp.sum(hh * a1_row, axis=1, keepdims=True)              # (N, 1)
        g_row = jax.lax.dot_general(
            a2_row, hh, (((1,), (1,)), ((), ())),
            preferred_element_type=jnp.float32)                          # (1, N)
        e = f_col + g_row                                                # (N, N)
        e = jnp.maximum(e, alpha * e)                                    # LeakyReLU, 0<alpha<1
        e = e - jnp.max(e, axis=1, keepdims=True)                        # stable softmax
        p = jnp.exp(e)
        s = jnp.sum(p, axis=1, keepdims=True)
        inv = pl.reciprocal(s, approx=True)                              # EUP slot
        inv = inv * (2.0 - s * inv)                                      # one Newton step -> ~exact
        return jnp.dot(p * inv, hh, preferred_element_type=jnp.float32)  # (N, F)

    def elu(v):  # ELU(alpha=1): v if v>0 else exp(v)-1  (clamp exp arg; elu(0)=0)
        return jnp.where(v > 0.0, v, jnp.exp(jnp.minimum(v, 0.0)) - 1.0)

    # (2) Per-graph, per-head attention (block-diagonal — cannot be fused across
    # graphs).  Head slices are 128-lane aligned so slicing/concat is free.
    x1_parts = []
    for g in range(graphs):
        h_g = h_all[g * N:(g + 1) * N, :]                                # (N, H*nhid_pad)
        hps = []
        for k in range(nheads):
            hh = h_g[:, k * nhid_pad:(k + 1) * nhid_pad]                 # (N, nhid_pad)
            a1 = a_ref[2 * k:2 * k + 1, :nhid_pad]
            a2 = a_ref[2 * k + 1:2 * k + 2, :nhid_pad]
            hps.append(elu(attention(hh, a1, a2)))                       # concat=True -> ELU
        x1_parts.append(jnp.concatenate(hps, axis=-1))                   # (N, H*nhid_pad)

    # (3) ONE MXU matmul for the output projection across all graphs & heads:
    #     x1_all @ W_out  (replaces H small matmuls per graph).
    x1_all = jnp.concatenate(x1_parts, axis=0)                           # (G*N, H*nhid_pad)
    hout_all = jnp.dot(x1_all, w_o, preferred_element_type=jnp.float32)  # (G*N, P)

    # (4) Output attention layer (concat=False -> raw h'), then the module's
    # final ELU.  No log_softmax; adj never applied (matches reference).
    a1o = a_ref[2 * nheads:2 * nheads + 1, :P]
    a2o = a_ref[2 * nheads + 1:2 * nheads + 2, :P]
    for g in range(graphs):
        h_out = hout_all[g * N:(g + 1) * N, :]                           # (N, P)
        o = elu(attention(h_out, a1o, a2o))                              # (N, P)
        out_ref[0, g * N:(g + 1) * N, :] = o.astype(out_ref.dtype)


# --------------------------- parameter init / packing ----------------------

def _xavier_uniform(key, shape, gain):
    # torch convention for 2-D tensors: fan_in = shape[1], fan_out = shape[0]
    fan_in, fan_out = shape[1], shape[0]
    bound = gain * (6.0 / (fan_in + fan_out)) ** 0.5
    return jax.random.uniform(key, shape, jnp.float32, -bound, bound)


def init_gat_params(key, nfeat, nhid, noutput, nheads, gain=1.414):
    params = {"heads": []}
    for _ in range(nheads):
        key, k1, k2 = jax.random.split(key, 3)
        params["heads"].append({
            "W": _xavier_uniform(k1, (nfeat, nhid), gain),
            "a": _xavier_uniform(k2, (2 * nhid, 1), gain),
        })
    key, k1, k2 = jax.random.split(key, 3)
    params["out"] = {
        "W": _xavier_uniform(k1, (nhid * nheads, noutput), gain),
        "a": _xavier_uniform(k2, (2 * noutput, 1), gain),
    }
    return params


def pack_gat_params(params):
    """One-time packing into the fused kernel's lane-aligned layout."""
    heads = params["heads"]
    nheads = len(heads)
    nfeat, nhid = heads[0]["W"].shape
    noutput = params["out"]["W"].shape[1]

    nhid_pad = _round_up(nhid, LANE)        # 128-lane aligned per-head slice
    p_pad = _round_up(noutput, LANE)        # lane-dense output width
    hid_cat = nheads * nhid_pad
    a_w = max(nhid_pad, p_pad)

    w_heads = jnp.zeros((nfeat, hid_cat), jnp.float32)
    a_all = jnp.zeros((2 * nheads + 2, a_w), jnp.float32)
    for k, hd in enumerate(heads):
        w_heads = w_heads.at[:, k * nhid_pad:k * nhid_pad + nhid].set(hd["W"])
        a = hd["a"]                                          # (2*nhid, 1)
        a_all = a_all.at[2 * k, :nhid].set(a[:nhid, 0])
        a_all = a_all.at[2 * k + 1, :nhid].set(a[nhid:, 0])

    w_out = jnp.zeros((hid_cat, p_pad), jnp.float32)
    W_o = params["out"]["W"]                                 # (nheads*nhid, noutput)
    for k in range(nheads):
        w_out = w_out.at[k * nhid_pad:k * nhid_pad + nhid, :noutput].set(
            W_o[k * nhid:(k + 1) * nhid, :])
    a_o = params["out"]["a"]                                 # (2*noutput, 1)
    a_all = a_all.at[2 * nheads, :noutput].set(a_o[:noutput, 0])
    a_all = a_all.at[2 * nheads + 1, :noutput].set(a_o[noutput:, 0])

    return {
        "W_heads": w_heads, "a_all": a_all, "W_out": w_out,
        "nheads": nheads, "nhid": nhid, "nhid_pad": nhid_pad,
        "nfeat": nfeat, "noutput": noutput, "p_pad": p_pad,
    }


# ------------------------------ GAT forward --------------------------------

def _semantics_candidates(num_groups):
    """Preferred (v7x CORE_PARALLEL) + safe fallback dimension semantics."""
    cands = []
    core_parallel = getattr(pltpu, "CORE_PARALLEL", None)
    if num_groups > 1 and core_parallel is not None and _CORE_PARALLEL_OK[0] is not False:
        cands.append(((core_parallel,), True))
    cands.append((("parallel",), False))
    return cands


def gat_forward(packed, x, alpha=0.2, max_graphs_per_step=8):
    """Fused GAT forward. x: (N, nfeat) single graph or (B, N, nfeat) batch."""
    single = x.ndim == 2
    xb = x[None] if single else x
    B, N, Fin = xb.shape
    assert Fin == packed["nfeat"]

    nheads = packed["nheads"]
    nhid_pad = packed["nhid_pad"]
    noutput = packed["noutput"]
    p_pad = packed["p_pad"]
    hid_cat = nheads * nhid_pad
    a_w = packed["a_all"].shape[1]

    # Graphs per grid step: all graphs in at most two steps (so both v7x
    # TensorCores get work when B > 1), capped to bound kernel unroll / VMEM.
    G = max(1, min((B + 1) // 2 if B > 1 else 1, max_graphs_per_step))
    num_groups = -(-B // G)
    B_pad = num_groups * G
    if B_pad != B:  # pad with zero graphs (their output is sliced away)
        xb = jnp.concatenate(
            [xb, jnp.zeros((B_pad - B, N, Fin), xb.dtype)], axis=0)
    x_flat = xb.reshape(num_groups, G * N, Fin)   # wrapper-side reshape: free

    kernel = functools.partial(_gat_fused_kernel, alpha=alpha, nheads=nheads,
                               nhid_pad=nhid_pad, n_nodes=N, graphs=G)

    def run(sem):
        return pl.pallas_call(
            kernel,
            out_shape=jax.ShapeDtypeStruct((num_groups, G * N, p_pad), jnp.float32),
            grid=(num_groups,),
            in_specs=[
                pl.BlockSpec((1, G * N, Fin), lambda b: (b, 0, 0)),
                pl.BlockSpec((Fin, hid_cat), lambda b: (0, 0)),
                pl.BlockSpec((2 * nheads + 2, a_w), lambda b: (0, 0)),
                pl.BlockSpec((hid_cat, p_pad), lambda b: (0, 0)),
            ],
            out_specs=pl.BlockSpec((1, G * N, p_pad), lambda b: (b, 0, 0)),
            compiler_params=pltpu.CompilerParams(dimension_semantics=sem),
        )(x_flat, packed["W_heads"], packed["a_all"], packed["W_out"])

    out = None
    err = None
    for sem, is_core_parallel in _semantics_candidates(num_groups):
        try:
            out = jax.block_until_ready(run(sem))
            if is_core_parallel:
                _CORE_PARALLEL_OK[0] = True
            break
        except Exception as e:  # core_parallel unsupported on this chip/jax -> fallback
            err = e
            if is_core_parallel:
                _CORE_PARALLEL_OK[0] = False
            else:
                raise
    if out is None:
        raise err

    out = out.reshape(B_pad, N, p_pad)[:B, :, :noutput]   # drop pad graphs + lane padding
    return out[0] if single else out


# --------------------------- pure-JAX reference ----------------------------

def gat_reference(params, x, alpha=0.2):
    def layer(xx, W, a, concat):
        h = xx @ W
        fout = W.shape[1]
        f = h @ a[:fout, :]
        g = h @ a[fout:, :]
        e = f + g.T
        e = jnp.where(e >= 0.0, e, alpha * e)
        att = jax.nn.softmax(e, axis=1)
        hp = att @ h
        return jax.nn.elu(hp) if concat else hp

    x1 = jnp.concatenate(
        [layer(x, h["W"], h["a"], True) for h in params["heads"]], axis=1)
    return jax.nn.elu(layer(x1, params["out"]["W"], params["out"]["a"], False))


if __name__ == "__main__":
    N, nfeat, nhid, noutput, nheads = 8, 16, 32, 16, 2

    key = jax.random.PRNGKey(0)
    kx, kp, kb = jax.random.split(key, 3)
    x = jax.random.normal(kx, (N, nfeat), dtype=jnp.float32)
    params = init_gat_params(kp, nfeat, nhid, noutput, nheads)
    packed = pack_gat_params(params)

    # single-graph forward (matches the PyTorch module's signature)
    out = jax.block_until_ready(gat_forward(packed, x))
    assert out.shape == (N, noutput), out.shape
    assert bool(jnp.all(jnp.isfinite(out)))

    # numerical check against a pure-JAX reference
    ref = gat_reference(params, x)
    assert bool(jnp.allclose(out, ref, rtol=1e-2, atol=1e-2)), \
        float(jnp.max(jnp.abs(out - ref)))

    # batched path: 4 graphs -> 2 groups of 2 per grid step (core-parallel on v7x)
    xb = jax.random.normal(kb, (4, N, nfeat), dtype=jnp.float32)
    outb = jax.block_until_ready(gat_forward(packed, xb))
    assert outb.shape == (4, N, noutput), outb.shape
    assert bool(jnp.all(jnp.isfinite(outb)))
    refb = jax.vmap(lambda xx: gat_reference(params, xx))(xb)
    assert bool(jnp.allclose(outb, refb, rtol=1e-2, atol=1e-2)), \
        float(jnp.max(jnp.abs(outb - refb)))

    # odd batch exercises the zero-graph padding path (5 -> 2 groups of 3)
    xb5 = jax.random.normal(kb, (5, N, nfeat), dtype=jnp.float32)
    outb5 = jax.block_until_ready(gat_forward(packed, xb5))
    assert outb5.shape == (5, N, noutput), outb5.shape
    assert bool(jnp.all(jnp.isfinite(outb5)))

    print("KERNEL_OK")
</pallas_src>

<mosaic_0001>
module attributes {stable_mosaic.version = 11 : i64} {
  func.func @_gat_fused_kernel(%arg0: i32, %arg1: memref<1x8x16xf32, #tpu.memory_space<vmem>>, %arg2: memref<16x256xf32, #tpu.memory_space<vmem>>, %arg3: memref<6x128xf32, #tpu.memory_space<vmem>>, %arg4: memref<256x128xf32, #tpu.memory_space<vmem>>, %arg5: memref<1x8x128xf32, #tpu.memory_space<vmem>>) attributes {dimension_semantics = [#tpu.dimension_semantics<parallel>], iteration_bounds = array<i64: 1>, scalar_prefetch = 0 : i64, scratch_operands = 0 : i64, tpu.core_type = #tpu.core_type<tc>, window_params = [{transform_indices = @transform_0, window_bounds = array<i64: 1, 8, 16>}, {pipeline_mode = #tpu.pipeline_mode<synchronous>, transform_indices = @transform_1, window_bounds = array<i64: 16, 256>}, {pipeline_mode = #tpu.pipeline_mode<synchronous>, transform_indices = @transform_2, window_bounds = array<i64: 6, 128>}, {pipeline_mode = #tpu.pipeline_mode<synchronous>, transform_indices = @transform_3, window_bounds = array<i64: 256, 128>}, {transform_indices = @transform_4, window_bounds = array<i64: 1, 8, 128>}]} {
    %c0 = arith.constant 0 : index
    %c0_0 = arith.constant 0 : index
    %c0_1 = arith.constant 0 : index
    %0 = vector.load %arg1[%c0, %c0_0, %c0_1] : memref<1x8x16xf32, #tpu.memory_space<vmem>>, vector<1x8x16xf32>
    %1 = vector.shape_cast %0 : vector<1x8x16xf32> to vector<8x16xf32>
    %c0_2 = arith.constant 0 : index
    %c0_3 = arith.constant 0 : index
    %2 = vector.load %arg2[%c0_2, %c0_3] : memref<16x256xf32, #tpu.memory_space<vmem>>, vector<16x256xf32>
    %c0_4 = arith.constant 0 : index
    %c0_5 = arith.constant 0 : index
    %3 = vector.load %arg4[%c0_4, %c0_5] : memref<256x128xf32, #tpu.memory_space<vmem>>, vector<256x128xf32>
    %cst = arith.constant dense<0.000000e+00> : vector<8x256xf32>
    %4 = tpu.matmul %1, %2, %cst {dimension_numbers = #tpu.dot_dimension_numbers<[1], [0], [0], [1], [0, 0, 1, 1], [], []>} : vector<8x16xf32>, vector<16x256xf32>, vector<8x256xf32> -> vector<8x256xf32>
    %5 = vector.extract_strided_slice %4 {offsets = [0, 0], sizes = [8, 128], strides = [1, 1]} : vector<8x256xf32> to vector<8x128xf32>
    %c0_6 = arith.constant 0 : index
    %c0_7 = arith.constant 0 : index
    %6 = vector.load %arg3[%c0_6, %c0_7] : memref<6x128xf32, #tpu.memory_space<vmem>>, vector<1x128xf32>
    %c1 = arith.constant 1 : index
    %c0_8 = arith.constant 0 : index
    %7 = vector.load %arg3[%c1, %c0_8] : memref<6x128xf32, #tpu.memory_space<vmem>>, vector<1x128xf32>
    %8 = vector.broadcast %6 : vector<1x128xf32> to vector<8x128xf32>
    %9 = arith.mulf %5, %8 : vector<8x128xf32>
    %cst_9 = arith.constant dense<0.000000e+00> : vector<8xf32>
    %10 = vector.multi_reduction <add>, %9, %cst_9 [1] : vector<8x128xf32> to vector<8xf32>
    %11 = vector.shape_cast %10 : vector<8xf32> to vector<8x1xf32>
    %cst_10 = arith.constant dense<0.000000e+00> : vector<1x8xf32>
    %12 = tpu.matmul %7, %5, %cst_10 {dimension_numbers = #tpu.dot_dimension_numbers<[1], [1], [0], [0], [0, 0, 1, 0], [], []>} : vector<1x128xf32>, vector<8x128xf32>, vector<1x8xf32> -> vector<1x8xf32>
    %13 = vector.broadcast %11 : vector<8x1xf32> to vector<8x8xf32>
    %14 = vector.broadcast %12 : vector<1x8xf32> to vector<8x8xf32>
    %15 = arith.addf %13, %14 : vector<8x8xf32>
    %cst_11 = arith.constant 2.000000e-01 : f32
    %16 = vector.broadcast %cst_11 : f32 to vector<8x8xf32>
    %17 = arith.mulf %16, %15 : vector<8x8xf32>
    %18 = arith.maximumf %15, %17 : vector<8x8xf32>
    %cst_12 = arith.constant dense<0xFF800000> : vector<8xf32>
    %19 = vector.multi_reduction <maximumf>, %18, %cst_12 [1] : vector<8x8xf32> to vector<8xf32>
    %20 = vector.shape_cast %19 : vector<8xf32> to vector<8x1xf32>
    %21 = vector.broadcast %20 : vector<8x1xf32> to vector<8x8xf32>
    %22 = arith.subf %18, %21 : vector<8x8xf32>
    %23 = math.exp %22 : vector<8x8xf32>
    %cst_13 = arith.constant dense<0.000000e+00> : vector<8xf32>
    %24 = vector.multi_reduction <add>, %23, %cst_13 [1] : vector<8x8xf32> to vector<8xf32>
    %25 = vector.shape_cast %24 : vector<8xf32> to vector<8x1xf32>
    %26 = tpu.reciprocal %25 {approx = true} : vector<8x1xf32> -> vector<8x1xf32>
    %27 = arith.mulf %25, %26 : vector<8x1xf32>
    %cst_14 = arith.constant 2.000000e+00 : f32
    %28 = vector.broadcast %cst_14 : f32 to vector<8x1xf32>
    %29 = arith.subf %28, %27 : vector<8x1xf32>
    %30 = arith.mulf %26, %29 : vector<8x1xf32>
    %31 = vector.broadcast %30 : vector<8x1xf32> to vector<8x8xf32>
    %32 = arith.mulf %23, %31 : vector<8x8xf32>
    %cst_15 = arith.constant dense<0.000000e+00> : vector<8x128xf32>
    %33 = tpu.matmul %32, %5, %cst_15 {dimension_numbers = #tpu.dot_dimension_numbers<[1], [0], [0], [1], [0, 0, 1, 1], [], []>} : vector<8x8xf32>, vector<8x128xf32>, vector<8x128xf32> -> vector<8x128xf32>
    %cst_16 = arith.constant 0.000000e+00 : f32
    %34 = vector.broadcast %cst_16 : f32 to vector<8x128xf32>
    %35 = arith.cmpf ogt, %33, %34 : vector<8x128xf32>
    %cst_17 = arith.constant 0.000000e+00 : f32
    %36 = vector.broadcast %cst_17 : f32 to vector<8x128xf32>
    %37 = arith.minimumf %33, %36 : vector<8x128xf32>
    %38 = math.exp %37 : vector<8x128xf32>
    %cst_18 = arith.constant 1.000000e+00 : f32
    %39 = vector.broadcast %cst_18 : f32 to vector<8x128xf32>
    %40 = arith.subf %38, %39 : vector<8x128xf32>
    %41 = arith.select %35, %33, %40 : vector<8x128xi1>, vector<8x128xf32>
    %42 = vector.extract_strided_slice %4 {offsets = [0, 128], sizes = [8, 128], strides = [1, 1]} : vector<8x256xf32> to vector<8x128xf32>
    %c2 = arith.constant 2 : index
    %c0_19 = arith.constant 0 : index
    %43 = vector.load %arg3[%c2, %c0_19] : memref<6x128xf32, #tpu.memory_space<vmem>>, vector<1x128xf32>
    %c3 = arith.constant 3 : index
    %c0_20 = arith.constant 0 : index
    %44 = vector.load %arg3[%c3, %c0_20] : memref<6x128xf32, #tpu.memory_space<vmem>>, vector<1x128xf32>
    %45 = vector.broadcast %43 : vector<1x128xf32> to vector<8x128xf32>
    %46 = arith.mulf %42, %45 : vector<8x128xf32>
    %cst_21 = arith.constant dense<0.000000e+00> : vector<8xf32>
    %47 = vector.multi_reduction <add>, %46, %cst_21 [1] : vector<8x128xf32> to vector<8xf32>
    %48 = vector.shape_cast %47 : vector<8xf32> to vector<8x1xf32>
    %cst_22 = arith.constant dense<0.000000e+00> : vector<1x8xf32>
    %49 = tpu.matmul %44, %42, %cst_22 {dimension_numbers = #tpu.dot_dimension_numbers<[1], [1], [0], [0], [0, 0, 1, 0], [], []>} : vector<1x128xf32>, vector<8x128xf32>, vector<1x8xf32> -> vector<1x8xf32>
    %50 = vector.broadcast %48 : vector<8x1xf32> to vector<8x8xf32>
    %51 = vector.broadcast %49 : vector<1x8xf32> to vector<8x8xf32>
    %52 = arith.addf %50, %51 : vector<8x8xf32>
    %cst_23 = arith.constant 2.000000e-01 : f32
    %53 = vector.broadcast %cst_23 : f32 to vector<8x8xf32>
    %54 = arith.mulf %53, %52 : vector<8x8xf32>
    %55 = arith.maximumf %52, %54 : vector<8x8xf32>
    %cst_24 = arith.constant dense<0xFF800000> : vector<8xf32>
    %56 = vector.multi_reduction <maximumf>, %55, %cst_24 [1] : vector<8x8xf32> to vector<8xf32>
    %57 = vector.shape_cast %56 : vector<8xf32> to vector<8x1xf32>
    %58 = vector.broadcast %57 : vector<8x1xf32> to vector<8x8xf32>
    %59 = arith.subf %55, %58 : vector<8x8xf32>
    %60 = math.exp %59 : vector<8x8xf32>
    %cst_25 = arith.constant dense<0.000000e+00> : vector<8xf32>
    %61 = vector.multi_reduction <add>, %60, %cst_25 [1] : vector<8x8xf32> to vector<8xf32>
    %62 = vector.shape_cast %61 : vector<8xf32> to vector<8x1xf32>
    %63 = tpu.reciprocal %62 {approx = true} : vector<8x1xf32> -> vector<8x1xf32>
    %64 = arith.mulf %62, %63 : vector<8x1xf32>
    %cst_26 = arith.constant 2.000000e+00 : f32
    %65 = vector.broadcast %cst_26 : f32 to vector<8x1xf32>
    %66 = arith.subf %65, %64 : vector<8x1xf32>
    %67 = arith.mulf %63, %66 : vector<8x1xf32>
    %68 = vector.broadcast %67 : vector<8x1xf32> to vector<8x8xf32>
    %69 = arith.mulf %60, %68 : vector<8x8xf32>
    %cst_27 = arith.constant dense<0.000000e+00> : vector<8x128xf32>
    %70 = tpu.matmul %69, %42, %cst_27 {dimension_numbers = #tpu.dot_dimension_numbers<[1], [0], [0], [1], [0, 0, 1, 1], [], []>} : vector<8x8xf32>, vector<8x128xf32>, vector<8x128xf32> -> vector<8x128xf32>
    %cst_28 = arith.constant 0.000000e+00 : f32
    %71 = vector.broadcast %cst_28 : f32 to vector<8x128xf32>
    %72 = arith.cmpf ogt, %70, %71 : vector<8x128xf32>
    %cst_29 = arith.constant 0.000000e+00 : f32
    %73 = vector.broadcast %cst_29 : f32 to vector<8x128xf32>
    %74 = arith.minimumf %70, %73 : vector<8x128xf32>
    %75 = math.exp %74 : vector<8x128xf32>
    %cst_30 = arith.constant 1.000000e+00 : f32
    %76 = vector.broadcast %cst_30 : f32 to vector<8x128xf32>
    %77 = arith.subf %75, %76 : vector<8x128xf32>
    %78 = arith.select %72, %70, %77 : vector<8x128xi1>, vector<8x128xf32>
    %79 = tpu.concatenate %41, %78 in 1 : vector<8x128xf32>, vector<8x128xf32> -> vector<8x256xf32>
    %cst_31 = arith.constant dense<0.000000e+00> : vector<8x128xf32>
    %80 = tpu.matmul %79, %3, %cst_31 {dimension_numbers = #tpu.dot_dimension_numbers<[1], [0], [0], [1], [0, 0, 1, 1], [], []>} : vector<8x256xf32>, vector<256x128xf32>, vector<8x128xf32> -> vector<8x128xf32>
    %c4 = arith.constant 4 : index
    %c0_32 = arith.constant 0 : index
    %81 = vector.load %arg3[%c4, %c0_32] : memref<6x128xf32, #tpu.memory_space<vmem>>, vector<1x128xf32>
    %c5 = arith.constant 5 : index
    %c0_33 = arith.constant 0 : index
    %82 = vector.load %arg3[%c5, %c0_33] : memref<6x128xf32, #tpu.memory_space<vmem>>, vector<1x128xf32>
    %83 = vector.broadcast %81 : vector<1x128xf32> to vector<8x128xf32>
    %84 = arith.mulf %80, %83 : vector<8x128xf32>
    %cst_34 = arith.constant dense<0.000000e+00> : vector<8xf32>
    %85 = vector.multi_reduction <add>, %84, %cst_34 [1] : vector<8x128xf32> to vector<8xf32>
    %86 = vector.shape_cast %85 : vector<8xf32> to vector<8x1xf32>
    %cst_35 = arith.constant dense<0.000000e+00> : vector<1x8xf32>
    %87 = tpu.matmul %82, %80, %cst_35 {dimension_numbers = #tpu.dot_dimension_numbers<[1], [1], [0], [0], [0, 0, 1, 0], [], []>} : vector<1x128xf32>, vector<8x128xf32>, vector<1x8xf32> -> vector<1x8xf32>
    %88 = vector.broadcast %86 : vector<8x1xf32> to vector<8x8xf32>
    %89 = vector.broadcast %87 : vector<1x8xf32> to vector<8x8xf32>
    %90 = arith.addf %88, %89 : vector<8x8xf32>
    %cst_36 = arith.constant 2.000000e-01 : f32
    %91 = vector.broadcast %cst_36 : f32 to vector<8x8xf32>
    %92 = arith.mulf %91, %90 : vector<8x8xf32>
    %93 = arith.maximumf %90, %92 : vector<8x8xf32>
    %cst_37 = arith.constant dense<0xFF800000> : vector<8xf32>
    %94 = vector.multi_reduction <maximumf>, %93, %cst_37 [1] : vector<8x8xf32> to vector<8xf32>
    %95 = vector.shape_cast %94 : vector<8xf32> to vector<8x1xf32>
    %96 = vector.broadcast %95 : vector<8x1xf32> to vector<8x8xf32>
    %97 = arith.subf %93, %96 : vector<8x8xf32>
    %98 = math.exp %97 : vector<8x8xf32>
    %cst_38 = arith.constant dense<0.000000e+00> : vector<8xf32>
    %99 = vector.multi_reduction <add>, %98, %cst_38 [1] : vector<8x8xf32> to vector<8xf32>
    %100 = vector.shape_cast %99 : vector<8xf32> to vector<8x1xf32>
    %101 = tpu.reciprocal %100 {approx = true} : vector<8x1xf32> -> vector<8x1xf32>
    %102 = arith.mulf %100, %101 : vector<8x1xf32>
    %cst_39 = arith.constant 2.000000e+00 : f32
    %103 = vector.broadcast %cst_39 : f32 to vector<8x1xf32>
    %104 = arith.subf %103, %102 : vector<8x1xf32>
    %105 = arith.mulf %101, %104 : vector<8x1xf32>
    %106 = vector.broadcast %105 : vector<8x1xf32> to vector<8x8xf32>
    %107 = arith.mulf %98, %106 : vector<8x8xf32>
    %cst_40 = arith.constant dense<0.000000e+00> : vector<8x128xf32>
    %108 = tpu.matmul %107, %80, %cst_40 {dimension_numbers = #tpu.dot_dimension_numbers<[1], [0], [0], [1], [0, 0, 1, 1], [], []>} : vector<8x8xf32>, vector<8x128xf32>, vector<8x128xf32> -> vector<8x128xf32>
    %cst_41 = arith.constant 0.000000e+00 : f32
    %109 = vector.broadcast %cst_41 : f32 to vector<8x128xf32>
    %110 = arith.cmpf ogt, %108, %109 : vector<8x128xf32>
    %cst_42 = arith.constant 0.000000e+00 : f32
    %111 = vector.broadcast %cst_42 : f32 to vector<8x128xf32>
    %112 = arith.minimumf %108, %111 : vector<8x128xf32>
    %113 = math.exp %112 : vector<8x128xf32>
    %cst_43 = arith.constant 1.000000e+00 : f32
    %114 = vector.broadcast %cst_43 : f32 to vector<8x128xf32>
    %115 = arith.subf %113, %114 : vector<8x128xf32>
    %116 = arith.select %110, %108, %115 : vector<8x128xi1>, vector<8x128xf32>
    %c0_44 = arith.constant 0 : index
    %c0_45 = arith.constant 0 : index
    %c0_46 = arith.constant 0 : index
    %117 = vector.load %arg5[%c0_44, %c0_45, %c0_46] : memref<1x8x128xf32, #tpu.memory_space<vmem>>, vector<1x8x128xf32>
    %118 = vector.shape_cast %117 : vector<1x8x128xf32> to vector<8x128xf32>
    %119 = vector.shape_cast %116 : vector<8x128xf32> to vector<1x8x128xf32>
    tpu.vector_store %arg5[%c0_44, %c0_45, %c0_46], %119 {strides = array<i32>} : memref<1x8x128xf32, #tpu.memory_space<vmem>>, vector<1x8x128xf32>,
    return
  }
  func.func @transform_0(%arg0: i32) -> (i32, i32, i32) {
    %c0_i32 = arith.constant 0 : i32
    %c0_i32_0 = arith.constant 0 : i32
    %c0_i32_1 = arith.constant 0 : i32
    return %arg0, %c0_i32, %c0_i32_0 : i32, i32, i32
  }
  func.func @transform_1(%arg0: i32) -> (i32, i32) {
    %c0_i32 = arith.constant 0 : i32
    %c0_i32_0 = arith.constant 0 : i32
    %c0_i32_1 = arith.constant 0 : i32
    return %c0_i32, %c0_i32_0 : i32, i32
  }
  func.func @transform_2(%arg0: i32) -> (i32, i32) {
    %c0_i32 = arith.constant 0 : i32
    %c0_i32_0 = arith.constant 0 : i32
    %c0_i32_1 = arith.constant 0 : i32
    return %c0_i32, %c0_i32_0 : i32, i32
  }
  func.func @transform_3(%arg0: i32) -> (i32, i32) {
    %c0_i32 = arith.constant 0 : i32
    %c0_i32_0 = arith.constant 0 : i32
    %c0_i32_1 = arith.constant 0 : i32
    return %c0_i32, %c0_i32_0 : i32, i32
  }
  func.func @transform_4(%arg0: i32) -> (i32, i32, i32) {
    %c0_i32 = arith.constant 0 : i32
    %c0_i32_0 = arith.constant 0 : i32
    %c0_i32_1 = arith.constant 0 : i32
    return %arg0, %c0_i32, %c0_i32_0 : i32, i32, i32
  }
}

</mosaic_0001>

<llo_original>
// kernel: tpu_custom_call.1
$region0: #{tpu_custom_call.1}
  #allocation0 [shape = 'u32[]', space=smem, size = 0x4, offset = 0x4, fixed_abs, tag = 'smem constant byte address 0x4 - core index']
  #allocation1 [shape = 'u32[144,128]{1,0:T(1,128)}', space=vmem, size = 0x12000, scoped, tag = 'internal scratch']
  %s0 = inlined_call_operand.hbm [shape: f32[1,8,16], index: 0, kind: input, shape index: {}]
  %s1 = inlined_call_operand.hbm [shape: f32[16,256], index: 1, kind: input, shape index: {}]
  %s2 = inlined_call_operand.hbm [shape: f32[6,128], index: 2, kind: input, shape index: {}]
  %s3 = inlined_call_operand.hbm [shape: f32[256,128], index: 3, kind: input, shape index: {}]
  %s4 = inlined_call_operand.hbm [shape: f32[1,8,128], index: 4, kind: output, shape index: {}]
  %s5 = sld [smem:[#allocation0]]
  $region42: #{tpu_custom_call.1} parent=0
    _
  %s7 = ssub.s32 1, %s5
  %s8 = scalar_select 0, %s7, %s5
  $region1: #{tpu_custom_call.1} parent=0
    #allocation2 [shape = 'u8[4096]{0}', space=vmem, size = 0x1000, scoped, tag = 'input window, operand 0, single buffered']
    #allocation3 [shape = 's32[1]{0}', space=sflag, size = 0x4, scoped, tag = 'scoped memory for tpu_custom_call.1']
    #allocation4 [shape = 's32[1]{0}', space=sflag, size = 0x4, scoped, tag = 'scoped memory for tpu_custom_call.1']
    #allocation5 [shape = 'u8[16384]{0}', space=vmem, size = 0x4000, scoped, tag = 'input window, operand 1, single buffered']
    #allocation6 [shape = 's32[1]{0}', space=sflag, size = 0x4, scoped, tag = 'scoped memory for tpu_custom_call.1']
    #allocation7 [shape = 'u8[4096]{0}', space=vmem, size = 0x1000, scoped, tag = 'input window, operand 2, single buffered']
    #allocation8 [shape = 'u8[131072]{0}', space=vmem, size = 0x20000, scoped, tag = 'input window, operand 3, single buffered']
    #allocation9 [shape = 's32[1]{0}', space=sflag, size = 0x4, scoped, tag = 'scoped memory for tpu_custom_call.1']
    #allocation10 [shape = 'u8[4096]{0}', space=vmem, size = 0x1000, scoped, tag = 'output window, operand 0, single buffered']
    %9 = vsyncpa [#allocation3], 0
    %10 = vsyncpa [#allocation6], 0
    %11 = vsyncpa [#allocation9], 0
    %12 = vsyncpa [#allocation4], 0
    // Predicated region
    $region2: #{tpu_custom_call.1} parent=1 // pred_check
      _
    $region3: #{tpu_custom_call.1} parent=1 // pred_check_branch
      %14 = sbr.rel (0) target = $region5
    $region4: #{tpu_custom_call.1} parent=1 // pred_region
      %s16 = ssub.s32 128, 128
      %17 = vsyncadd [#allocation3], %s16
      %s19 = sshll.u32 [#allocation2], 4
      %s20 = int_to_ptr.vmem [resolvable:$true] %s19
      %22 = dma.hbm_to_vmem [thread:$0]  %s0, 128, %s20, [#allocation3]
    $region5: #{tpu_custom_call.1} parent=1 // pred_fallthru
      _
    // Predicated region
    $region6: #{tpu_custom_call.1} parent=1 // pred_check
      _
    $region7: #{tpu_custom_call.1} parent=1 // pred_check_branch
      %24 = sbr.rel (0) target = $region9
    $region8: #{tpu_custom_call.1} parent=1 // pred_region
      %s26 = ssub.s32 512, 512
      %27 = vsyncadd [#allocation6], %s26
      %s28 = sshll.u32 [#allocation5], 4
      %s29 = int_to_ptr.vmem [resolvable:$true] %s28
      %34 = dma.hbm_to_vmem [thread:$0]  %s1, 512, %s29, [#allocation6], 256, 256, 16
    $region9: #{tpu_custom_call.1} parent=1 // pred_fallthru
      _
    // Predicated region
    $region10: #{tpu_custom_call.1} parent=1 // pred_check
      _
    $region11: #{tpu_custom_call.1} parent=1 // pred_check_branch
      %36 = sbr.rel (0) target = $region13
    $region12: #{tpu_custom_call.1} parent=1 // pred_region
      %s38 = ssub.s32 128, 128
      %39 = vsyncadd [#allocation6], %s38
      %s41 = sshll.u32 [#allocation7], 4
      %s42 = int_to_ptr.vmem [resolvable:$true] %s41
      %44 = dma.hbm_to_vmem [thread:$0]  %s2, 128, %s42, [#allocation6]
    $region13: #{tpu_custom_call.1} parent=1 // pred_fallthru
      _
    // Predicated region
    $region14: #{tpu_custom_call.1} parent=1 // pred_check
      _
    $region15: #{tpu_custom_call.1} parent=1 // pred_check_branch
      %46 = sbr.rel (0) target = $region17
    $region16: #{tpu_custom_call.1} parent=1 // pred_region
      %s48 = ssub.s32 4096, 4096
      %49 = vsyncadd [#allocation9], %s48
      %s50 = sshll.u32 [#allocation8], 4
      %s51 = int_to_ptr.vmem [resolvable:$true] %s50
      %56 = dma.hbm_to_vmem [thread:$0]  %s3, 4096, %s51, [#allocation9], 128, 128, 8
    $region17: #{tpu_custom_call.1} parent=1 // pred_fallthru
      _
    // Predicated region
    $region18: #{tpu_custom_call.1} parent=1 // pred_check
      _
    $region19: #{tpu_custom_call.1} parent=1 // pred_check_branch
      %58 = sbr.rel (0) target = $region21
    $region20: #{tpu_custom_call.1} parent=1 // pred_region
      %59 = dma.done [#allocation3], 128
    $region21: #{tpu_custom_call.1} parent=1 // pred_fallthru
      _
    // Predicated region
    $region22: #{tpu_custom_call.1} parent=1 // pred_check
      _
    $region23: #{tpu_custom_call.1} parent=1 // pred_check_branch
      %61 = sbr.rel (0) target = $region25
    $region24: #{tpu_custom_call.1} parent=1 // pred_region
      %62 = dma.done [#allocation6], 512
    $region25: #{tpu_custom_call.1} parent=1 // pred_fallthru
      _
    // Predicated region
    $region26: #{tpu_custom_call.1} parent=1 // pred_check
      _
    $region27: #{tpu_custom_call.1} parent=1 // pred_check_branch
      %64 = sbr.rel (0) target = $region29
    $region28: #{tpu_custom_call.1} parent=1 // pred_region
      %65 = dma.done [#allocation6], 128
    $region29: #{tpu_custom_call.1} parent=1 // pred_fallthru
      _
    // Predicated region
    $region30: #{tpu_custom_call.1} parent=1 // pred_check
      _
    $region31: #{tpu_custom_call.1} parent=1 // pred_check_branch
      %67 = sbr.rel (0) target = $region33
    $region32: #{tpu_custom_call.1} parent=1 // pred_region
      %68 = dma.done [#allocation9], 4096
    $region33: #{tpu_custom_call.1} parent=1 // pred_fallthru
      _
    %v69 = vld [vmem:[#allocation2] sm:$0xff]
    %v70 = vld [vmem:[#allocation5] sm:$0xff]
    %v71 = vld [vmem:[#allocation5 + $0x8] sm:$0xff]
    %v72 = vld [vmem:[#allocation5 + $0x10] sm:$0xff]
    %v73 = vld [vmem:[#allocation5 + $0x18] sm:$0xff]
    %v74 = vld [vmem:[#allocation8] sm:$0xff]
    %v75 = vld [vmem:[#allocation8 + $0x8] sm:$0xff]
    %v76 = vld [vmem:[#allocation8 + $0x10] sm:$0xff]
    %v77 = vld [vmem:[#allocation8 + $0x18] sm:$0xff]
    %v78 = vld [vmem:[#allocation8 + $0x20] sm:$0xff]
    %v79 = vld [vmem:[#allocation8 + $0x28] sm:$0xff]
    %v80 = vld [vmem:[#allocation8 + $0x30] sm:$0xff]
    %v81 = vld [vmem:[#allocation8 + $0x38] sm:$0xff]
    %v82 = vld [vmem:[#allocation8 + $0x40] sm:$0xff]
    %v83 = vld [vmem:[#allocation8 + $0x48] sm:$0xff]
    %v84 = vld [vmem:[#allocation8 + $0x50] sm:$0xff]
    %v85 = vld [vmem:[#allocation8 + $0x58] sm:$0xff]
    %v86 = vld [vmem:[#allocation8 + $0x60] sm:$0xff]
    %v87 = vld [vmem:[#allocation8 + $0x68] sm:$0xff]
    %v88 = vld [vmem:[#allocation8 + $0x70] sm:$0xff]
    %v89 = vld [vmem:[#allocation8 + $0x78] sm:$0xff]
    %v90 = vld [vmem:[#allocation8 + $0x80] sm:$0xff]
    %v91 = vld [vmem:[#allocation8 + $0x88] sm:$0xff]
    %v92 = vld [vmem:[#allocation8 + $0x90] sm:$0xff]
    %v93 = vld [vmem:[#allocation8 + $0x98] sm:$0xff]
    %v94 = vld [vmem:[#allocation8 + $0xa0] sm:$0xff]
    %v95 = vld [vmem:[#allocation8 + $0xa8] sm:$0xff]
    %v96 = vld [vmem:[#allocation8 + $0xb0] sm:$0xff]
    %v97 = vld [vmem:[#allocation8 + $0xb8] sm:$0xff]
    %v98 = vld [vmem:[#allocation8 + $0xc0] sm:$0xff]
    %v99 = vld [vmem:[#allocation8 + $0xc8] sm:$0xff]
    %v100 = vld [vmem:[#allocation8 + $0xd0] sm:$0xff]
    %v101 = vld [vmem:[#allocation8 + $0xd8] sm:$0xff]
    %v102 = vld [vmem:[#allocation8 + $0xe0] sm:$0xff]
    %v103 = vld [vmem:[#allocation8 + $0xe8] sm:$0xff]
    %v104 = vld [vmem:[#allocation8 + $0xf0] sm:$0xff]
    %v105 = vld [vmem:[#allocation8 + $0xf8] sm:$0xff]
    %vm106 = vcmask 130048
    %v108 = vsel %vm106, %v69, 0
    %110 = vmatprep.subr.mxu0 %v71
    %111 = vmatpush1.msra.mxu0 %v70
    %112 = vmatprep.subr.mxu0 %v73
    %113 = vmatpush1.msra.mxu0 %v72
    %114 = vmatprep.subr.mxu0 0.0
    %115 = vmatpush1.msra.mxu0 0.0
    %116 = vmatprep.subr.mxu0 0.0
    %117 = vmatpush1.msra.mxu0 0.0
    %118 = vmatprep.subr.mxu0 0.0
    %119 = vmatpush1.msra.mxu0 0.0
    %120 = vmatprep.subr.mxu0 0.0
    %121 = vmatpush1.msra.mxu0 0.0
    %122 = vmatprep.subr.mxu0 0.0
    %123 = vmatpush1.msra.mxu0 0.0
    %124 = vmatprep.subr.mxu0 0.0
    %125 = vmatpush1.msra.mxu0 0.0
    %126 = vmatprep.subr.mxu0 0.0
    %127 = vmatpush1.msra.mxu0 0.0
    %128 = vmatprep.subr.mxu0 0.0
    %129 = vmatpush1.msra.mxu0 0.0
    %130 = vmatprep.subr.mxu0 0.0
    %131 = vmatpush1.msra.mxu0 0.0
    %132 = vmatprep.subr.mxu0 0.0
    %133 = vmatpush1.msra.mxu0 0.0
    %134 = vmatprep.subr.mxu0 0.0
    %135 = vmatpush1.msra.mxu0 0.0
    %136 = vmatprep.subr.mxu0 0.0
    %137 = vmatpush1.msra.mxu0 0.0
    %138 = vmatprep.subr.mxu0 0.0
    %139 = vmatpush1.msra.mxu0 0.0
    %140 = vmatprep.subr.mxu0 0.0
    %141 = vmatpush1.msra.mxu0 0.0
    %142 = vmatprep.subr.mxu0 0.0
    %143 = vmatpush1.msra.mxu0 0.0
    %144 = vmatprep.subr.mxu0 0.0
    %145 = vmatpush1.msra.mxu0 0.0
    %146 = vmatprep.subr.mxu0 0.0
    %147 = vmatpush1.msra.mxu0 0.0
    %148 = vmatprep.subr.mxu0 0.0
    %149 = vmatpush1.msra.mxu0 0.0
    %150 = vmatprep.subr.mxu0 0.0
    %151 = vmatpush1.msra.mxu0 0.0
    %152 = vmatprep.subr.mxu0 0.0
    %153 = vmatpush1.msra.mxu0 0.0
    %154 = vmatprep.subr.mxu0 0.0
    %155 = vmatpush1.msra.mxu0 0.0
    %156 = vmatprep.subr.mxu0 0.0
    %157 = vmatpush1.msra.mxu0 0.0
    %158 = vmatprep.subr.mxu0 0.0
    %159 = vmatpush1.msra.mxu0 0.0
    %160 = vmatprep.subr.mxu0 0.0
    %161 = vmatpush1.msra.mxu0 0.0
    %162 = vmatprep.subr.mxu0 0.0
    %163 = vmatpush1.msra.mxu0 0.0
    %164 = vmatprep.subr.mxu0 0.0
    %165 = vmatpush1.msra.mxu0 0.0
    %166 = vmatprep.subr.mxu0 0.0
    %167 = vmatpush1.msra.mxu0 0.0
    %168 = vmatprep.subr.mxu0 0.0
    %169 = vmatpush1.msra.mxu0 0.0
    %170 = vmatprep.subr.mxu0 0.0
    %171 = vmatpush1.msra.mxu0 0.0
    %172 = vmatprep.subr.mxu0 0.0
    %173 = vmatpush1.msra.mxu0 0.0
    %174 = vmatprep.mubr.f32.mxu0 0.0
    %175 = vmatmul.mubr.f32.gmra.mrb[0].mxu0 %v108
    %v176 = vpop.f32.mrb[0].mxu0
    %v177 = vadd.f32 0.0, %v176
    %v178 = vpop.f32.mrb[0].mxu0
    %v179 = vadd.f32 0.0, %v178
    %180 = vdwg.mxu0
    %v181 = vld [vmem:[#allocation7] sm:$0x1]
    %v182 = vld [vmem:[#allocation7 + $0x1] sm:$0x1]
    %v183 = vlaneseq
    %v184 = vshrl.u32 %v183, 7
    %v185 = vsub.s32 0, %v184
    %v186 = vrot.slane %v181, %v185
    %v187 = vmul.f32 %v177, %v186
    %188 = vadd.xlane.f32.xlu0 %v187
    %v189 = vpop.xlane.xlu0 %188
    %190 = vmatprep.subr.mxu0 0.0
    %191 = vmatpush1.xpose.msra.mxu0 %v177
    %192 = vmatprep.subr.mxu0 0.0
    %193 = vmatpush1.xpose.msra.mxu0 0.0
    %194 = vmatprep.subr.mxu0 0.0
    %195 = vmatpush1.xpose.msra.mxu0 0.0
    %196 = vmatprep.subr.mxu0 0.0
    %197 = vmatpush1.xpose.msra.mxu0 0.0
    %198 = vmatprep.subr.mxu0 0.0
    %199 = vmatpush1.xpose.msra.mxu0 0.0
    %200 = vmatprep.subr.mxu0 0.0
    %201 = vmatpush1.xpose.msra.mxu0 0.0
    %202 = vmatprep.subr.mxu0 0.0
    %203 = vmatpush1.xpose.msra.mxu0 0.0
    %204 = vmatprep.subr.mxu0 0.0
    %205 = vmatpush1.xpose.msra.mxu0 0.0
    %206 = vmatprep.subr.mxu0 0.0
    %207 = vmatpush1.xpose.msra.mxu0 0.0
    %208 = vmatprep.subr.mxu0 0.0
    %209 = vmatpush1.xpose.msra.mxu0 0.0
    %210 = vmatprep.subr.mxu0 0.0
    %211 = vmatpush1.xpose.msra.mxu0 0.0
    %212 = vmatprep.subr.mxu0 0.0
    %213 = vmatpush1.xpose.msra.mxu0 0.0
    %214 = vmatprep.subr.mxu0 0.0
    %215 = vmatpush1.xpose.msra.mxu0 0.0
    %216 = vmatprep.subr.mxu0 0.0
    %217 = vmatpush1.xpose.msra.mxu0 0.0
    %218 = vmatprep.subr.mxu0 0.0
    %219 = vmatpush1.xpose.msra.mxu0 0.0
    %220 = vmatprep.subr.mxu0 0.0
    %221 = vmatpush1.xpose.msra.mxu0 0.0
    %222 = vmatprep.subr.mxu0 0.0
    %223 = vmatpush1.xpose.msra.mxu0 0.0
    %224 = vmatprep.subr.mxu0 0.0
    %225 = vmatpush1.xpose.msra.mxu0 0.0
    %226 = vmatprep.subr.mxu0 0.0
    %227 = vmatpush1.xpose.msra.mxu0 0.0
    %228 = vmatprep.subr.mxu0 0.0
    %229 = vmatpush1.xpose.msra.mxu0 0.0
    %230 = vmatprep.subr.mxu0 0.0
    %231 = vmatpush1.xpose.msra.mxu0 0.0
    %232 = vmatprep.subr.mxu0 0.0
    %233 = vmatpush1.xpose.msra.mxu0 0.0
    %234 = vmatprep.subr.mxu0 0.0
    %235 = vmatpush1.xpose.msra.mxu0 0.0
    %236 = vmatprep.subr.mxu0 0.0
    %237 = vmatpush1.xpose.msra.mxu0 0.0
    %238 = vmatprep.subr.mxu0 0.0
    %239 = vmatpush1.xpose.msra.mxu0 0.0
    %240 = vmatprep.subr.mxu0 0.0
    %241 = vmatpush1.xpose.msra.mxu0 0.0
    %242 = vmatprep.subr.mxu0 0.0
    %243 = vmatpush1.xpose.msra.mxu0 0.0
    %244 = vmatprep.subr.mxu0 0.0
    %245 = vmatpush1.xpose.msra.mxu0 0.0
    %246 = vmatprep.subr.mxu0 0.0
    %247 = vmatpush1.xpose.msra.mxu0 0.0
    %248 = vmatprep.subr.mxu0 0.0
    %249 = vmatpush1.xpose.msra.mxu0 0.0
    %250 = vmatprep.subr.mxu0 0.0
    %251 = vmatpush1.xpose.msra.mxu0 0.0
    %252 = vmatprep.subr.mxu0 0.0
    %253 = vmatpush1.xpose.msra.mxu0 0.0
    %254 = vmatprep.mubr.f32.mxu0 0.0
    %255 = vmatmul.mubr.f32.gmra.mrb[0].mxu0 %v182
    %v256 = vpop.f32.mrb[0].mxu0
    %v257 = vadd.f32 0.0, %v256
    %v258 = vpop.f32.mrb[0].mxu0
    %259 = vdwg.mxu0
    %v260 = vlaneseq
    %v261 = vshrl.u32 %v260, 7
    %v262 = vsub.s32 0, %v261
    %v263 = vrot.slane %v257, %v262
    %v264 = vadd.f32 %v189, %v263
    %v265 = vmul.f32 %v264, 0.2
    %v266 = vmax.f32 %v264, %v265
    %vm267 = vcmask 64512
    %v268 = vsel %vm267, %v266, -inf
    %269 = vmax.xlane.f32.xlu0 %v268
    %v270 = vpop.xlane.xlu0 %269
    %v271 = vsub.f32 %v266, %v270
    %v272 = vmul.f32 %v271, 1.442695
    %v273 = vpow.pop %v272
    %v274 = vsel %vm267, %v273, 0.0
    %275 = vadd.xlane.f32.xlu0 %v274
    %v276 = vpop.xlane.xlu0 %275
    %v277 = vrcp.pop %v276
    %v278 = vmul.f32 %v276, %v277
    %v279 = vsub.f32 2.0, %v278
    %v280 = vmul.f32 %v277, %v279
    %v281 = vmul.f32 %v273, %v280
    %v283 = vsel %vm267, %v281, 0
    %285 = vmatprep.subr.mxu0 0.0
    %286 = vmatpush1.msra.mxu0 %v177
    %287 = vmatprep.subr.mxu0 0.0
    %288 = vmatpush1.msra.mxu0 0.0
    %289 = vmatprep.subr.mxu0 0.0
    %290 = vmatpush1.msra.mxu0 0.0
    %291 = vmatprep.subr.mxu0 0.0
    %292 = vmatpush1.msra.mxu0 0.0
    %293 = vmatprep.subr.mxu0 0.0
    %294 = vmatpush1.msra.mxu0 0.0
    %295 = vmatprep.subr.mxu0 0.0
    %296 = vmatpush1.msra.mxu0 0.0
    %297 = vmatprep.subr.mxu0 0.0
    %298 = vmatpush1.msra.mxu0 0.0
    %299 = vmatprep.subr.mxu0 0.0
    %300 = vmatpush1.msra.mxu0 0.0
    %301 = vmatprep.subr.mxu0 0.0
    %302 = vmatpush1.msra.mxu0 0.0
    %303 = vmatprep.subr.mxu0 0.0
    %304 = vmatpush1.msra.mxu0 0.0
    %305 = vmatprep.subr.mxu0 0.0
    %306 = vmatpush1.msra.mxu0 0.0
    %307 = vmatprep.subr.mxu0 0.0
    %308 = vmatpush1.msra.mxu0 0.0
    %309 = vmatprep.subr.mxu0 0.0
    %310 = vmatpush1.msra.mxu0 0.0
    %311 = vmatprep.subr.mxu0 0.0
    %312 = vmatpush1.msra.mxu0 0.0
    %313 = vmatprep.subr.mxu0 0.0
    %314 = vmatpush1.msra.mxu0 0.0
    %315 = vmatprep.subr.mxu0 0.0
    %316 = vmatpush1.msra.mxu0 0.0
    %317 = vmatprep.subr.mxu0 0.0
    %318 = vmatpush1.msra.mxu0 0.0
    %319 = vmatprep.subr.mxu0 0.0
    %320 = vmatpush1.msra.mxu0 0.0
    %321 = vmatprep.subr.mxu0 0.0
    %322 = vmatpush1.msra.mxu0 0.0
    %323 = vmatprep.subr.mxu0 0.0
    %324 = vmatpush1.msra.mxu0 0.0
    %325 = vmatprep.subr.mxu0 0.0
    %326 = vmatpush1.msra.mxu0 0.0
    %327 = vmatprep.subr.mxu0 0.0
    %328 = vmatpush1.msra.mxu0 0.0
    %329 = vmatprep.subr.mxu0 0.0
    %330 = vmatpush1.msra.mxu0 0.0
    %331 = vmatprep.subr.mxu0 0.0
    %332 = vmatpush1.msra.mxu0 0.0
    %333 = vmatprep.subr.mxu0 0.0
    %334 = vmatpush1.msra.mxu0 0.0
    %335 = vmatprep.subr.mxu0 0.0
    %336 = vmatpush1.msra.mxu0 0.0
    %337 = vmatprep.subr.mxu0 0.0
    %338 = vmatpush1.msra.mxu0 0.0
    %339 = vmatprep.subr.mxu0 0.0
    %340 = vmatpush1.msra.mxu0 0.0
    %341 = vmatprep.subr.mxu0 0.0
    %342 = vmatpush1.msra.mxu0 0.0
    %343 = vmatprep.subr.mxu0 0.0
    %344 = vmatpush1.msra.mxu0 0.0
    %345 = vmatprep.subr.mxu0 0.0
    %346 = vmatpush1.msra.mxu0 0.0
    %347 = vmatprep.subr.mxu0 0.0
    %348 = vmatpush1.msra.mxu0 0.0
    %349 = vmatprep.mubr.f32.mxu0 0.0
    %350 = vmatmul.mubr.f32.gmra.mrb[0].mxu0 %v283
    %v351 = vpop.f32.mrb[0].mxu0
    %v352 = vadd.f32 0.0, %v351
    %v353 = vpop.f32.mrb[0].mxu0
    %354 = vdwg.mxu0
    %vm355 = vcmp.gt.f32.partialorder %v352, 0.0
    %v356 = vmin.f32 %v352, 0.0
    %v357 = vmul.f32 %v356, 1.442695
    %v358 = vpow.pop %v357
    %v359 = vsub.f32 %v358, 1.0
    %v360 = vsel %vm355, %v352, %v359
    %v361 = vld [vmem:[#allocation7 + $0x2] sm:$0x1]
    %v362 = vld [vmem:[#allocation7 + $0x3] sm:$0x1]
    %v363 = vlaneseq
    %v364 = vshrl.u32 %v363, 7
    %v365 = vsub.s32 0, %v364
    %v366 = vrot.slane %v361, %v365
    %v367 = vmul.f32 %v179, %v366
    %368 = vadd.xlane.f32.xlu0 %v367
    %v369 = vpop.xlane.xlu0 %368
    %370 = vmatprep.subr.mxu0 0.0
    %371 = vmatpush1.xpose.msra.mxu0 %v179
    %372 = vmatprep.subr.mxu0 0.0
    %373 = vmatpush1.xpose.msra.mxu0 0.0
    %374 = vmatprep.subr.mxu0 0.0
    %375 = vmatpush1.xpose.msra.mxu0 0.0
    %376 = vmatprep.subr.mxu0 0.0
    %377 = vmatpush1.xpose.msra.mxu0 0.0
    %378 = vmatprep.subr.mxu0 0.0
    %379 = vmatpush1.xpose.msra.mxu0 0.0
    %380 = vmatprep.subr.mxu0 0.0
    %381 = vmatpush1.xpose.msra.mxu0 0.0
    %382 = vmatprep.subr.mxu0 0.0
    %383 = vmatpush1.xpose.msra.mxu0 0.0
    %384 = vmatprep.subr.mxu0 0.0
    %385 = vmatpush1.xpose.msra.mxu0 0.0
    %386 = vmatprep.subr.mxu0 0.0
    %387 = vmatpush1.xpose.msra.mxu0 0.0
    %388 = vmatprep.subr.mxu0 0.0
    %389 = vmatpush1.xpose.msra.mxu0 0.0
    %390 = vmatprep.subr.mxu0 0.0
    %391 = vmatpush1.xpose.msra.mxu0 0.0
    %392 = vmatprep.subr.mxu0 0.0
    %393 = vmatpush1.xpose.msra.mxu0 0.0
    %394 = vmatprep.subr.mxu0 0.0
    %395 = vmatpush1.xpose.msra.mxu0 0.0
    %396 = vmatprep.subr.mxu0 0.0
    %397 = vmatpush1.xpose.msra.mxu0 0.0
    %398 = vmatprep.subr.mxu0 0.0
    %399 = vmatpush1.xpose.msra.mxu0 0.0
    %400 = vmatprep.subr.mxu0 0.0
    %401 = vmatpush1.xpose.msra.mxu0 0.0
    %402 = vmatprep.subr.mxu0 0.0
    %403 = vmatpush1.xpose.msra.mxu0 0.0
    %404 = vmatprep.subr.mxu0 0.0
    %405 = vmatpush1.xpose.msra.mxu0 0.0
    %406 = vmatprep.subr.mxu0 0.0
    %407 = vmatpush1.xpose.msra.mxu0 0.0
    %408 = vmatprep.subr.mxu0 0.0
    %409 = vmatpush1.xpose.msra.mxu0 0.0
    %410 = vmatprep.subr.mxu0 0.0
    %411 = vmatpush1.xpose.msra.mxu0 0.0
    %412 = vmatprep.subr.mxu0 0.0
    %413 = vmatpush1.xpose.msra.mxu0 0.0
    %414 = vmatprep.subr.mxu0 0.0
    %415 = vmatpush1.xpose.msra.mxu0 0.0
    %416 = vmatprep.subr.mxu0 0.0
    %417 = vmatpush1.xpose.msra.mxu0 0.0
    %418 = vmatprep.subr.mxu0 0.0
    %419 = vmatpush1.xpose.msra.mxu0 0.0
    %420 = vmatprep.subr.mxu0 0.0
    %421 = vmatpush1.xpose.msra.mxu0 0.0
    %422 = vmatprep.subr.mxu0 0.0
    %423 = vmatpush1.xpose.msra.mxu0 0.0
    %424 = vmatprep.subr.mxu0 0.0
    %425 = vmatpush1.xpose.msra.mxu0 0.0
    %426 = vmatprep.subr.mxu0 0.0
    %427 = vmatpush1.xpose.msra.mxu0 0.0
    %428 = vmatprep.subr.mxu0 0.0
    %429 = vmatpush1.xpose.msra.mxu0 0.0
    %430 = vmatprep.subr.mxu0 0.0
    %431 = vmatpush1.xpose.msra.mxu0 0.0
    %432 = vmatprep.subr.mxu0 0.0
    %433 = vmatpush1.xpose.msra.mxu0 0.0
    %434 = vmatprep.mubr.f32.mxu0 0.0
    %435 = vmatmul.mubr.f32.gmra.mrb[0].mxu0 %v362
    %v436 = vpop.f32.mrb[0].mxu0
    %v437 = vadd.f32 0.0, %v436
    %v438 = vpop.f32.mrb[0].mxu0
    %439 = vdwg.mxu0
    %v440 = vlaneseq
    %v441 = vshrl.u32 %v440, 7
    %v442 = vsub.s32 0, %v441
    %v443 = vrot.slane %v437, %v442
    %v444 = vadd.f32 %v369, %v443
    %v445 = vmul.f32 %v444, 0.2
    %v446 = vmax.f32 %v444, %v445
    %v447 = vsel %vm267, %v446, -inf
    %448 = vmax.xlane.f32.xlu0 %v447
    %v449 = vpop.xlane.xlu0 %448
    %v450 = vsub.f32 %v446, %v449
    %v451 = vmul.f32 %v450, 1.442695
    %v452 = vpow.pop %v451
    %v453 = vsel %vm267, %v452, 0.0
    %454 = vadd.xlane.f32.xlu0 %v453
    %v455 = vpop.xlane.xlu0 %454
    %v456 = vrcp.pop %v455
    %v457 = vmul.f32 %v455, %v456
    %v458 = vsub.f32 2.0, %v457
    %v459 = vmul.f32 %v456, %v458
    %v460 = vmul.f32 %v452, %v459
    %v462 = vsel %vm267, %v460, 0
    %464 = vmatprep.subr.mxu0 0.0
    %465 = vmatpush1.msra.mxu0 %v179
    %466 = vmatprep.subr.mxu0 0.0
    %467 = vmatpush1.msra.mxu0 0.0
    %468 = vmatprep.subr.mxu0 0.0
    %469 = vmatpush1.msra.mxu0 0.0
    %470 = vmatprep.subr.mxu0 0.0
    %471 = vmatpush1.msra.mxu0 0.0
    %472 = vmatprep.subr.mxu0 0.0
    %473 = vmatpush1.msra.mxu0 0.0
    %474 = vmatprep.subr.mxu0 0.0
    %475 = vmatpush1.msra.mxu0 0.0
    %476 = vmatprep.subr.mxu0 0.0
    %477 = vmatpush1.msra.mxu0 0.0
    %478 = vmatprep.subr.mxu0 0.0
    %479 = vmatpush1.msra.mxu0 0.0
    %480 = vmatprep.subr.mxu0 0.0
    %481 = vmatpush1.msra.mxu0 0.0
    %482 = vmatprep.subr.mxu0 0.0
    %483 = vmatpush1.msra.mxu0 0.0
    %484 = vmatprep.subr.mxu0 0.0
    %485 = vmatpush1.msra.mxu0 0.0
    %486 = vmatprep.subr.mxu0 0.0
    %487 = vmatpush1.msra.mxu0 0.0
    %488 = vmatprep.subr.mxu0 0.0
    %489 = vmatpush1.msra.mxu0 0.0
    %490 = vmatprep.subr.mxu0 0.0
    %491 = vmatpush1.msra.mxu0 0.0
    %492 = vmatprep.subr.mxu0 0.0
    %493 = vmatpush1.msra.mxu0 0.0
    %494 = vmatprep.subr.mxu0 0.0
    %495 = vmatpush1.msra.mxu0 0.0
    %496 = vmatprep.subr.mxu0 0.0
    %497 = vmatpush1.msra.mxu0 0.0
    %498 = vmatprep.subr.mxu0 0.0
    %499 = vmatpush1.msra.mxu0 0.0
    %500 = vmatprep.subr.mxu0 0.0
    %501 = vmatpush1.msra.mxu0 0.0
    %502 = vmatprep.subr.mxu0 0.0
    %503 = vmatpush1.msra.mxu0 0.0
    %504 = vmatprep.subr.mxu0 0.0
    %505 = vmatpush1.msra.mxu0 0.0
    %506 = vmatprep.subr.mxu0 0.0
    %507 = vmatpush1.msra.mxu0 0.0
    %508 = vmatprep.subr.mxu0 0.0
    %509 = vmatpush1.msra.mxu0 0.0
    %510 = vmatprep.subr.mxu0 0.0
    %511 = vmatpush1.msra.mxu0 0.0
    %512 = vmatprep.subr.mxu0 0.0
    %513 = vmatpush1.msra.mxu0 0.0
    %514 = vmatprep.subr.mxu0 0.0
    %515 = vmatpush1.msra.mxu0 0.0
    %516 = vmatprep.subr.mxu0 0.0
    %517 = vmatpush1.msra.mxu0 0.0
    %518 = vmatprep.subr.mxu0 0.0
    %519 = vmatpush1.msra.mxu0 0.0
    %520 = vmatprep.subr.mxu0 0.0
    %521 = vmatpush1.msra.mxu0 0.0
    %522 = vmatprep.subr.mxu0 0.0
    %523 = vmatpush1.msra.mxu0 0.0
    %524 = vmatprep.subr.mxu0 0.0
    %525 = vmatpush1.msra.mxu0 0.0
    %526 = vmatprep.subr.mxu0 0.0
    %527 = vmatpush1.msra.mxu0 0.0
    %528 = vmatprep.mubr.f32.mxu0 0.0
    %529 = vmatmul.mubr.f32.gmra.mrb[0].mxu0 %v462
    %v530 = vpop.f32.mrb[0].mxu0
    %v531 = vadd.f32 0.0, %v530
    %v532 = vpop.f32.mrb[0].mxu0
    %533 = vdwg.mxu0
    %vm534 = vcmp.gt.f32.partialorder %v531, 0.0
    %v535 = vmin.f32 %v531, 0.0
    %v536 = vmul.f32 %v535, 1.442695
    %v537 = vpow.pop %v536
    %v538 = vsub.f32 %v537, 1.0
    %v539 = vsel %vm534, %v531, %v538
    %540 = vmatprep.subr.mxu0 0.0
    %541 = vmatpush1.msra.mxu0 %v74
    %542 = vmatprep.subr.mxu0 0.0
    %543 = vmatpush1.msra.mxu0 %v75
    %544 = vmatprep.subr.mxu0 0.0
    %545 = vmatpush1.msra.mxu0 %v76
    %546 = vmatprep.subr.mxu0 0.0
    %547 = vmatpush1.msra.mxu0 %v77
    %548 = vmatprep.subr.mxu0 0.0
    %549 = vmatpush1.msra.mxu0 %v78
    %550 = vmatprep.subr.mxu0 0.0
    %551 = vmatpush1.msra.mxu0 %v79
    %552 = vmatprep.subr.mxu0 0.0
    %553 = vmatpush1.msra.mxu0 %v80
    %554 = vmatprep.subr.mxu0 0.0
    %555 = vmatpush1.msra.mxu0 %v81
    %556 = vmatprep.subr.mxu0 0.0
    %557 = vmatpush1.msra.mxu0 %v82
    %558 = vmatprep.subr.mxu0 0.0
    %559 = vmatpush1.msra.mxu0 %v83
    %560 = vmatprep.subr.mxu0 0.0
    %561 = vmatpush1.msra.mxu0 %v84
    %562 = vmatprep.subr.mxu0 0.0
    %563 = vmatpush1.msra.mxu0 %v85
    %564 = vmatprep.subr.mxu0 0.0
    %565 = vmatpush1.msra.mxu0 %v86
    %566 = vmatprep.subr.mxu0 0.0
    %567 = vmatpush1.msra.mxu0 %v87
    %568 = vmatprep.subr.mxu0 0.0
    %569 = vmatpush1.msra.mxu0 %v88
    %570 = vmatprep.subr.mxu0 0.0
    %571 = vmatpush1.msra.mxu0 %v89
    %572 = vmatprep.subr.mxu0 0.0
    %573 = vmatpush1.msra.mxu0 %v90
    %574 = vmatprep.subr.mxu0 0.0
    %575 = vmatpush1.msra.mxu0 %v91
    %576 = vmatprep.subr.mxu0 0.0
    %577 = vmatpush1.msra.mxu0 %v92
    %578 = vmatprep.subr.mxu0 0.0
    %579 = vmatpush1.msra.mxu0 %v93
    %580 = vmatprep.subr.mxu0 0.0
    %581 = vmatpush1.msra.mxu0 %v94
    %582 = vmatprep.subr.mxu0 0.0
    %583 = vmatpush1.msra.mxu0 %v95
    %584 = vmatprep.subr.mxu0 0.0
    %585 = vmatpush1.msra.mxu0 %v96
    %586 = vmatprep.subr.mxu0 0.0
    %587 = vmatpush1.msra.mxu0 %v97
    %588 = vmatprep.subr.mxu0 0.0
    %589 = vmatpush1.msra.mxu0 %v98
    %590 = vmatprep.subr.mxu0 0.0
    %591 = vmatpush1.msra.mxu0 %v99
    %592 = vmatprep.subr.mxu0 0.0
    %593 = vmatpush1.msra.mxu0 %v100
    %594 = vmatprep.subr.mxu0 0.0
    %595 = vmatpush1.msra.mxu0 %v101
    %596 = vmatprep.subr.mxu0 0.0
    %597 = vmatpush1.msra.mxu0 %v102
    %598 = vmatprep.subr.mxu0 0.0
    %599 = vmatpush1.msra.mxu0 %v103
    %600 = vmatprep.subr.mxu0 0.0
    %601 = vmatpush1.msra.mxu0 %v104
    %602 = vmatprep.subr.mxu0 0.0
    %603 = vmatpush1.msra.mxu0 %v105
    %604 = vmatprep.mubr.f32.mxu0 %v539
    %605 = vmatmul.mubr.f32.gmra.mrb[0].mxu0 %v360
    %v606 = vpop.f32.mrb[0].mxu0
    %v607 = vadd.f32 0.0, %v606
    %v608 = vpop.f32.mrb[0].mxu0
    %609 = vdwg.mxu0
    %v610 = vld [vmem:[#allocation7 + $0x4] sm:$0x1]
    %v611 = vld [vmem:[#allocation7 + $0x5] sm:$0x1]
    %v612 = vlaneseq
    %v613 = vshrl.u32 %v612, 7
    %v614 = vsub.s32 0, %v613
    %v615 = vrot.slane %v610, %v614
    %v616 = vmul.f32 %v607, %v615
    %617 = vadd.xlane.f32.xlu0 %v616
    %v618 = vpop.xlane.xlu0 %617
    %619 = vmatprep.subr.mxu0 0.0
    %620 = vmatpush1.xpose.msra.mxu0 %v607
    %621 = vmatprep.subr.mxu0 0.0
    %622 = vmatpush1.xpose.msra.mxu0 0.0
    %623 = vmatprep.subr.mxu0 0.0
    %624 = vmatpush1.xpose.msra.mxu0 0.0
    %625 = vmatprep.subr.mxu0 0.0
    %626 = vmatpush1.xpose.msra.mxu0 0.0
    %627 = vmatprep.subr.mxu0 0.0
    %628 = vmatpush1.xpose.msra.mxu0 0.0
    %629 = vmatprep.subr.mxu0 0.0
    %630 = vmatpush1.xpose.msra.mxu0 0.0
    %631 = vmatprep.subr.mxu0 0.0
    %632 = vmatpush1.xpose.msra.mxu0 0.0
    %633 = vmatprep.subr.mxu0 0.0
    %634 = vmatpush1.xpose.msra.mxu0 0.0
    %635 = vmatprep.subr.mxu0 0.0
    %636 = vmatpush1.xpose.msra.mxu0 0.0
    %637 = vmatprep.subr.mxu0 0.0
    %638 = vmatpush1.xpose.msra.mxu0 0.0
    %639 = vmatprep.subr.mxu0 0.0
    %640 = vmatpush1.xpose.msra.mxu0 0.0
    %641 = vmatprep.subr.mxu0 0.0
    %642 = vmatpush1.xpose.msra.mxu0 0.0
    %643 = vmatprep.subr.mxu0 0.0
    %644 = vmatpush1.xpose.msra.mxu0 0.0
    %645 = vmatprep.subr.mxu0 0.0
    %646 = vmatpush1.xpose.msra.mxu0 0.0
    %647 = vmatprep.subr.mxu0 0.0
    %648 = vmatpush1.xpose.msra.mxu0 0.0
    %649 = vmatprep.subr.mxu0 0.0
    %650 = vmatpush1.xpose.msra.mxu0 0.0
    %651 = vmatprep.subr.mxu0 0.0
    %652 = vmatpush1.xpose.msra.mxu0 0.0
    %653 = vmatprep.subr.mxu0 0.0
    %654 = vmatpush1.xpose.msra.mxu0 0.0
    %655 = vmatprep.subr.mxu0 0.0
    %656 = vmatpush1.xpose.msra.mxu0 0.0
    %657 = vmatprep.subr.mxu0 0.0
    %658 = vmatpush1.xpose.msra.mxu0 0.0
    %659 = vmatprep.subr.mxu0 0.0
    %660 = vmatpush1.xpose.msra.mxu0 0.0
    %661 = vmatprep.subr.mxu0 0.0
    %662 = vmatpush1.xpose.msra.mxu0 0.0
    %663 = vmatprep.subr.mxu0 0.0
    %664 = vmatpush1.xpose.msra.mxu0 0.0
    %665 = vmatprep.subr.mxu0 0.0
    %666 = vmatpush1.xpose.msra.mxu0 0.0
    %667 = vmatprep.subr.mxu0 0.0
    %668 = vmatpush1.xpose.msra.mxu0 0.0
    %669 = vmatprep.subr.mxu0 0.0
    %670 = vmatpush1.xpose.msra.mxu0 0.0
    %671 = vmatprep.subr.mxu0 0.0
    %672 = vmatpush1.xpose.msra.mxu0 0.0
    %673 = vmatprep.subr.mxu0 0.0
    %674 = vmatpush1.xpose.msra.mxu0 0.0
    %675 = vmatprep.subr.mxu0 0.0
    %676 = vmatpush1.xpose.msra.mxu0 0.0
    %677 = vmatprep.subr.mxu0 0.0
    %678 = vmatpush1.xpose.msra.mxu0 0.0
    %679 = vmatprep.subr.mxu0 0.0
    %680 = vmatpush1.xpose.msra.mxu0 0.0
    %681 = vmatprep.subr.mxu0 0.0
    %682 = vmatpush1.xpose.msra.mxu0 0.0
    %683 = vmatprep.mubr.f32.mxu0 0.0
    %684 = vmatmul.mubr.f32.gmra.mrb[0].mxu0 %v611
    %v685 = vpop.f32.mrb[0].mxu0
    %v686 = vadd.f32 0.0, %v685
    %v687 = vpop.f32.mrb[0].mxu0
    %688 = vdwg.mxu0
    %v689 = vlaneseq
    %v690 = vshrl.u32 %v689, 7
    %v691 = vsub.s32 0, %v690
    %v692 = vrot.slane %v686, %v691
    %v693 = vadd.f32 %v618, %v692
    %v694 = vmul.f32 %v693, 0.2
    %v695 = vmax.f32 %v693, %v694
    %v696 = vsel %vm267, %v695, -inf
    %697 = vmax.xlane.f32.xlu0 %v696
    %v698 = vpop.xlane.xlu0 %697
    %v699 = vsub.f32 %v695, %v698
    %v700 = vmul.f32 %v699, 1.442695
    %v701 = vpow.pop %v700
    %v702 = vsel %vm267, %v701, 0.0
    %703 = vadd.xlane.f32.xlu0 %v702
    %v704 = vpop.xlane.xlu0 %703
    %v705 = vrcp.pop %v704
    %v706 = vmul.f32 %v704, %v705
    %v707 = vsub.f32 2.0, %v706
    %v708 = vmul.f32 %v705, %v707
    %v709 = vmul.f32 %v701, %v708
    %v711 = vsel %vm267, %v709, 0
    %713 = vmatprep.subr.mxu0 0.0
    %714 = vmatpush1.msra.mxu0 %v607
    %715 = vmatprep.subr.mxu0 0.0
    %716 = vmatpush1.msra.mxu0 0.0
    %717 = vmatprep.subr.mxu0 0.0
    %718 = vmatpush1.msra.mxu0 0.0
    %719 = vmatprep.subr.mxu0 0.0
    %720 = vmatpush1.msra.mxu0 0.0
    %721 = vmatprep.subr.mxu0 0.0
    %722 = vmatpush1.msra.mxu0 0.0
    %723 = vmatprep.subr.mxu0 0.0
    %724 = vmatpush1.msra.mxu0 0.0
    %725 = vmatprep.subr.mxu0 0.0
    %726 = vmatpush1.msra.mxu0 0.0
    %727 = vmatprep.subr.mxu0 0.0
    %728 = vmatpush1.msra.mxu0 0.0
    %729 = vmatprep.subr.mxu0 0.0
    %730 = vmatpush1.msra.mxu0 0.0
    %731 = vmatprep.subr.mxu0 0.0
    %732 = vmatpush1.msra.mxu0 0.0
    %733 = vmatprep.subr.mxu0 0.0
    %734 = vmatpush1.msra.mxu0 0.0
    %735 = vmatprep.subr.mxu0 0.0
    %736 = vmatpush1.msra.mxu0 0.0
    %737 = vmatprep.subr.mxu0 0.0
    %738 = vmatpush1.msra.mxu0 0.0
    %739 = vmatprep.subr.mxu0 0.0
    %740 = vmatpush1.msra.mxu0 0.0
    %741 = vmatprep.subr.mxu0 0.0
    %742 = vmatpush1.msra.mxu0 0.0
    %743 = vmatprep.subr.mxu0 0.0
    %744 = vmatpush1.msra.mxu0 0.0
    %745 = vmatprep.subr.mxu0 0.0
    %746 = vmatpush1.msra.mxu0 0.0
    %747 = vmatprep.subr.mxu0 0.0
    %748 = vmatpush1.msra.mxu0 0.0
    %749 = vmatprep.subr.mxu0 0.0
    %750 = vmatpush1.msra.mxu0 0.0
    %751 = vmatprep.subr.mxu0 0.0
    %752 = vmatpush1.msra.mxu0 0.0
    %753 = vmatprep.subr.mxu0 0.0
    %754 = vmatpush1.msra.mxu0 0.0
    %755 = vmatprep.subr.mxu0 0.0
    %756 = vmatpush1.msra.mxu0 0.0
    %757 = vmatprep.subr.mxu0 0.0
    %758 = vmatpush1.msra.mxu0 0.0
    %759 = vmatprep.subr.mxu0 0.0
    %760 = vmatpush1.msra.mxu0 0.0
    %761 = vmatprep.subr.mxu0 0.0
    %762 = vmatpush1.msra.mxu0 0.0
    %763 = vmatprep.subr.mxu0 0.0
    %764 = vmatpush1.msra.mxu0 0.0
    %765 = vmatprep.subr.mxu0 0.0
    %766 = vmatpush1.msra.mxu0 0.0
    %767 = vmatprep.subr.mxu0 0.0
    %768 = vmatpush1.msra.mxu0 0.0
    %769 = vmatprep.subr.mxu0 0.0
    %770 = vmatpush1.msra.mxu0 0.0
    %771 = vmatprep.subr.mxu0 0.0
    %772 = vmatpush1.msra.mxu0 0.0
    %773 = vmatprep.subr.mxu0 0.0
    %774 = vmatpush1.msra.mxu0 0.0
    %775 = vmatprep.subr.mxu0 0.0
    %776 = vmatpush1.msra.mxu0 0.0
    %777 = vmatprep.mubr.f32.mxu0 0.0
    %778 = vmatmul.mubr.f32.gmra.mrb[0].mxu0 %v711
    %v779 = vpop.f32.mrb[0].mxu0
    %v780 = vadd.f32 0.0, %v779
    %v781 = vpop.f32.mrb[0].mxu0
    %782 = vdwg.mxu0
    %vm783 = vcmp.gt.f32.partialorder %v780, 0.0
    %v784 = vmin.f32 %v780, 0.0
    %v785 = vmul.f32 %v784, 1.442695
    %v786 = vpow.pop %v785
    %v787 = vsub.f32 %v786, 1.0
    %v788 = vsel %vm783, %v780, %v787
    %789 = vst [vmem:[#allocation10] sm:$0xff] %v788
    // Predicated region
    $region34: #{tpu_custom_call.1} parent=1 // pred_check
      _
    $region35: #{tpu_custom_call.1} parent=1 // pred_check_branch
      %791 = sbr.rel (0) target = $region37
    $region36: #{tpu_custom_call.1} parent=1 // pred_region
      %s793 = ssub.s32 128, 128
      %794 = vsyncadd [#allocation4], %s793
      %s796 = sshll.u32 [#allocation10], 4
      %s797 = int_to_ptr.vmem [resolvable:$true] %s796
      %799 = dma.vmem_to_hbm [thread:$0]  %s797, 128, %s4, [#allocation4]
    $region37: #{tpu_custom_call.1} parent=1 // pred_fallthru
      _
    // Predicated region
    $region38: #{tpu_custom_call.1} parent=1 // pred_check
      _
    $region39: #{tpu_custom_call.1} parent=1 // pred_check_branch
      %801 = sbr.rel (0) target = $region41
    $region40: #{tpu_custom_call.1} parent=1 // pred_region
      %802 = dma.done [#allocation4], 128
    $region41: #{tpu_custom_call.1} parent=1 // pred_fallthru
      _
    %803 = vsyncpa [#allocation3], 1
    %804 = vsyncpa [#allocation6], 1
    %805 = vsyncpa [#allocation9], 1
    %806 = vsyncpa [#allocation4], 1

</llo_original>
